<compile_context>
chip_gen: v7x
topology: tpu7x:2x2x1
jax: 0.10.0
libtpu: 0.0.40
codegen_flags: <defaults>
</compile_context>

<pallas_src>
from functools import partial

import numpy as np
import jax
import jax.numpy as jnp
from jax.experimental import pallas as pl
from jax.experimental.pallas import tpu as pltpu

EPS_BN = 1e-5                      # PyTorch BatchNorm1d default eps
LOG_EPS = -13.815510557964274      # log(1e-6)
LANE = 128                         # TPU lane width


def _round_up(n, m=LANE):
    return -(-n // m) * m


# ----------------------------- fused kernel ----------------------------------
def pfe_fused_kernel(xcol_ref, pool_ref, wc_ref, bc_ref, wf_ref, bf_ref,
                     w1_ref, sh1_ref, w2_ref, sh2_ref, mu_ref, lss_ref):
    """TB images per grid step: conv3x3 (im2col) + ReLU + avg-pool + fc + head."""
    TB, HW, Kp = xcol_ref.shape

    # --- 3x3 conv as ONE lane-dense im2col matmul (bf16 ops, f32 acc) -------
    xcol = xcol_ref[...].reshape(TB * HW, Kp)                 # free reshape
    conv = jnp.dot(xcol, wc_ref[...], preferred_element_type=jnp.float32)
    conv = jnp.maximum(conv + bc_ref[...], 0.0)               # [TB*HW, Coutp]

    # --- global average pool on the MXU (block-diag 1/HW selector) ----------
    pooled = jnp.dot(pool_ref[...], conv,
                     preferred_element_type=jnp.float32)      # [TB, Coutp]

    # --- fc -> mu (f32 operands: tiny matmul, keeps accuracy tight) ---------
    mu = jnp.dot(pooled, wf_ref[...],
                 preferred_element_type=jnp.float32) + bf_ref[...]
    mu_ref[...] = mu                                          # [TB, Ep]

    # --- uncertainty head (eval-mode BN / gamma / beta folded into weights) -
    h = jnp.maximum(jnp.dot(mu, w1_ref[...],
                            preferred_element_type=jnp.float32) + sh1_ref[...],
                    0.0)
    y = jnp.dot(h, w2_ref[...],
                preferred_element_type=jnp.float32) + sh2_ref[...]
    # numerically stable log(1e-6 + exp(y))
    m = jnp.maximum(y, LOG_EPS)
    lss_ref[...] = m + jnp.log(jnp.exp(LOG_EPS - m) + jnp.exp(y - m))


# --------------------- one-time weight folding / padding ---------------------
def prepare_params(params):
    """Fold eval-mode BN + gamma/beta into weights, pad all N dims to 128 lanes."""
    Cout, C = params["conv_w"].shape[:2]
    E = params["fc_w"].shape[0]
    Kp = _round_up(9 * C)
    Coutp = _round_up(Cout)
    Ep = _round_up(E)

    # conv weight [Cout, C, 3, 3] -> im2col layout [9C, Cout] (tap-major, c fast)
    wc = jnp.transpose(params["conv_w"], (2, 3, 1, 0)).reshape(9 * C, Cout)
    wc = jnp.zeros((Kp, Coutp), jnp.float32).at[:9 * C, :Cout].set(wc)
    wc = wc.astype(jnp.bfloat16)
    bc = jnp.zeros((1, Coutp), jnp.float32).at[0, :Cout].set(params["conv_b"])
    wf = jnp.zeros((Coutp, Ep), jnp.float32).at[:Cout, :E].set(params["fc_w"].T)
    bf = jnp.zeros((1, Ep), jnp.float32).at[0, :E].set(params["fc_b"])

    # Fold eval-mode BatchNorm1d (and gamma/beta) into fc1/fc2.
    s1 = params["bn1_w"] / jnp.sqrt(params["bn1_rv"] + EPS_BN)
    t1 = params["bn1_b"] - params["bn1_rm"] * s1
    s2 = 1.0 / jnp.sqrt(params["bn2_rv"] + EPS_BN)
    t2 = -params["bn2_rm"] * s2
    gamma = params["gamma"][0]
    beta = params["beta"][0]
    w1 = jnp.zeros((Ep, Ep), jnp.float32).at[:E, :E].set(
        params["fc1_w"].T * s1[None, :])
    sh1 = jnp.zeros((1, Ep), jnp.float32).at[0, :E].set(
        params["fc1_b"] * s1 + t1)
    w2 = jnp.zeros((Ep, Ep), jnp.float32).at[:E, :E].set(
        params["fc2_w"].T * (gamma * s2)[None, :])
    sh2 = jnp.zeros((1, Ep), jnp.float32).at[0, :E].set(
        gamma * (params["fc2_b"] * s2 + t2) + beta)

    return {"wc": wc, "bc": bc, "wf": wf, "bf": bf,
            "w1": w1, "sh1": sh1, "w2": w2, "sh2": sh2}


# ------------------------------ forward wrapper -------------------------------
def _num_parallel_cores():
    """Chips whose TensorCores share a 'parallel' grid axis (megacore / dual-TC)."""
    try:
        kind = jax.devices()[0].device_kind.lower()
    except Exception:
        return 1
    return 2 if any(t in kind for t in ("v3", "v4", "v7")) else 1


def _const_spec(shape):
    """Full-array block, same block every grid step (weights / biases)."""
    zeros = (0,) * len(shape)
    return pl.BlockSpec(shape, lambda i: zeros)


@partial(jax.jit, static_argnames=("embedding_size", "num_steps"))
def _pfe_forward_impl(x, prep, embedding_size, num_steps):
    B, C, H, W = x.shape
    HW = H * W
    Kp, Coutp = prep["wc"].shape
    Ep = prep["wf"].shape[1]
    E = embedding_size

    TB = -(-B // num_steps)                 # images per grid step
    B_pad = TB * num_steps

    # --- host-side im2col (one fused XLA op under jit) -----------------------
    x_nhwc = jnp.transpose(x, (0, 2, 3, 1))
    xp = jnp.pad(x_nhwc, ((0, B_pad - B), (1, 1), (1, 1), (0, 0)))
    cols = [xp[:, u:u + H, v:v + W, :] for u in range(3) for v in range(3)]
    x_col = jnp.concatenate(cols, axis=-1).reshape(B_pad, HW, 9 * C)
    x_col = jnp.pad(x_col, ((0, 0), (0, 0), (0, Kp - 9 * C)))
    x_col = x_col.astype(jnp.bfloat16).reshape(num_steps, TB, HW, Kp)

    # Block-diagonal (1/HW) average-pool selector: pooled = pool @ conv.
    pool_np = np.zeros((TB, TB * HW), np.float32)
    for b in range(TB):
        pool_np[b, b * HW:(b + 1) * HW] = 1.0 / HW
    pool = jnp.asarray(pool_np)

    grid_spec = pltpu.PrefetchScalarGridSpec(
        num_scalar_prefetch=0,
        grid=(num_steps,),
        in_specs=[
            pl.BlockSpec((None, TB, HW, Kp), lambda i: (i, 0, 0, 0)),  # x_col
            _const_spec((TB, TB * HW)),      # avg-pool selector
            _const_spec((Kp, Coutp)),        # conv weight (im2col, bf16)
            _const_spec((1, Coutp)),         # conv bias
            _const_spec((Coutp, Ep)),        # fc weight
            _const_spec((1, Ep)),            # fc bias
            _const_spec((Ep, Ep)),           # fc1 weight (BN-folded)
            _const_spec((1, Ep)),            # fc1 shift
            _const_spec((Ep, Ep)),           # fc2 weight (BN/gamma-folded)
            _const_spec((1, Ep)),            # fc2 shift
        ],
        out_specs=[
            pl.BlockSpec((None, TB, Ep), lambda i: (i, 0, 0)),   # mu (padded)
            pl.BlockSpec((None, TB, Ep), lambda i: (i, 0, 0)),   # log_sigma_sq
        ],
    )

    mu3, lss3 = pl.pallas_call(
        pfe_fused_kernel,
        out_shape=(jax.ShapeDtypeStruct((num_steps, TB, Ep), jnp.float32),
                   jax.ShapeDtypeStruct((num_steps, TB, Ep), jnp.float32)),
        grid_spec=grid_spec,
        compiler_params=pltpu.CompilerParams(
            dimension_semantics=("parallel",)),   # dual-TC chips: 2 steps shard
    )(x_col, pool, prep["wc"], prep["bc"], prep["wf"], prep["bf"],
      prep["w1"], prep["sh1"], prep["w2"], prep["sh2"])

    mu = mu3.reshape(B_pad, Ep)[:B, :E]
    lss = lss3.reshape(B_pad, Ep)[:B, :E]
    return mu, lss


def pfe_forward(x, prep, embedding_size):
    B = x.shape[0]
    # v5e/v6e: single grid step (grid is a serial loop; steps are pure overhead).
    # v7x/v4/v3: 2 steps so "parallel" shards across both TensorCores.
    num_steps = 2 if (_num_parallel_cores() >= 2 and B >= 2) else 1
    return _pfe_forward_impl(x, prep, embedding_size, num_steps)


# ----------------------------- params / reference -----------------------------
def init_params(key, C, Cout, E):
    ks = jax.random.split(key, 16)
    n = lambda k, shape, s=0.1: s * jax.random.normal(k, shape, jnp.float32)
    return {
        # synthetic backbone: conv3x3 + fc head
        "conv_w": n(ks[0], (Cout, C, 3, 3)),
        "conv_b": n(ks[1], (Cout,)),
        "fc_w":   n(ks[2], (E, Cout)),
        "fc_b":   n(ks[3], (E,)),
        # uncertainty module
        "fc1_w":  n(ks[4], (E, E)),
        "fc1_b":  n(ks[5], (E,)),
        "bn1_w":  1.0 + n(ks[6], (E,)),
        "bn1_b":  n(ks[7], (E,)),
        "bn1_rm": n(ks[8], (E,)),
        "bn1_rv": jnp.abs(1.0 + n(ks[9], (E,))),
        "fc2_w":  n(ks[10], (E, E)),
        "fc2_b":  n(ks[11], (E,)),
        "bn2_rm": n(ks[12], (E,)),
        "bn2_rv": jnp.abs(1.0 + n(ks[13], (E,))),
        # PFE init: gamma = 1.0, beta = 0.0
        "gamma":  jnp.array([1.0], jnp.float32),
        "beta":   jnp.array([0.0], jnp.float32),
    }


def pfe_reference(x, params):
    """Pure-JAX f32 reference mirroring the PyTorch forward (eval mode)."""
    conv = jax.lax.conv_general_dilated(
        x, params["conv_w"], window_strides=(1, 1),
        padding=((1, 1), (1, 1)),
        dimension_numbers=("NCHW", "OIHW", "NCHW"))
    conv = jnp.maximum(conv + params["conv_b"][None, :, None, None], 0.0)
    pooled = conv.mean(axis=(2, 3))                               # [B, Cout]
    mu = pooled @ params["fc_w"].T + params["fc_b"]

    s1 = params["bn1_w"] / jnp.sqrt(params["bn1_rv"] + EPS_BN)
    t1 = params["bn1_b"] - params["bn1_rm"] * s1
    s2 = 1.0 / jnp.sqrt(params["bn2_rv"] + EPS_BN)
    t2 = -params["bn2_rm"] * s2
    h = jnp.maximum((mu @ params["fc1_w"].T + params["fc1_b"]) * s1 + t1, 0.0)
    y = (h @ params["fc2_w"].T + params["fc2_b"]) * s2 + t2
    y = params["gamma"] * y + params["beta"]
    return mu, jnp.log(1e-6 + jnp.exp(y))


if __name__ == "__main__":
    B, C, H, W = 2, 4, 16, 16
    Cout, E = 8, 32  # embedding_size = 32

    x = jax.random.normal(jax.random.PRNGKey(0), (B, C, H, W), jnp.float32)
    params = init_params(jax.random.PRNGKey(42), C, Cout, E)
    prep = prepare_params(params)          # one-time weight folding / padding

    mu, log_sigma_sq = pfe_forward(x, prep, E)
    mu = jax.block_until_ready(mu)
    log_sigma_sq = jax.block_until_ready(log_sigma_sq)

    mu_ref, lss_ref = pfe_reference(x, params)
    assert mu.shape == (B, E) and log_sigma_sq.shape == (B, E)
    # Only the conv matmul uses bf16 operands (f32 accumulation) -> loose tol.
    assert jnp.allclose(mu, mu_ref, atol=2e-2, rtol=2e-2), \
        float(jnp.max(jnp.abs(mu - mu_ref)))
    assert jnp.allclose(log_sigma_sq, lss_ref, atol=2e-2, rtol=2e-2), \
        float(jnp.max(jnp.abs(log_sigma_sq - lss_ref)))

    print("KERNEL_OK")
</pallas_src>

<mosaic_0001>
module attributes {stable_mosaic.version = 11 : i64} {
  func.func @pfe_fused_kernel(%arg0: i32, %arg1: memref<1x2x256x128xbf16, #tpu.memory_space<vmem>>, %arg2: memref<2x512xf32, #tpu.memory_space<vmem>>, %arg3: memref<128x128xbf16, #tpu.memory_space<vmem>>, %arg4: memref<1x128xf32, #tpu.memory_space<vmem>>, %arg5: memref<128x128xf32, #tpu.memory_space<vmem>>, %arg6: memref<1x128xf32, #tpu.memory_space<vmem>>, %arg7: memref<128x128xf32, #tpu.memory_space<vmem>>, %arg8: memref<1x128xf32, #tpu.memory_space<vmem>>, %arg9: memref<128x128xf32, #tpu.memory_space<vmem>>, %arg10: memref<1x128xf32, #tpu.memory_space<vmem>>, %arg11: memref<1x2x128xf32, #tpu.memory_space<vmem>>, %arg12: memref<1x2x128xf32, #tpu.memory_space<vmem>>) attributes {dimension_semantics = [#tpu.dimension_semantics<parallel>], iteration_bounds = array<i64: 1>, scalar_prefetch = 0 : i64, scratch_operands = 0 : i64, tpu.core_type = #tpu.core_type<tc>, window_params = [{transform_indices = @transform_0, window_bounds = array<i64: 1, 2, 256, 128>}, {pipeline_mode = #tpu.pipeline_mode<synchronous>, transform_indices = @transform_1, window_bounds = array<i64: 2, 512>}, {pipeline_mode = #tpu.pipeline_mode<synchronous>, transform_indices = @transform_2, window_bounds = array<i64: 128, 128>}, {pipeline_mode = #tpu.pipeline_mode<synchronous>, transform_indices = @transform_3, window_bounds = array<i64: 1, 128>}, {pipeline_mode = #tpu.pipeline_mode<synchronous>, transform_indices = @transform_4, window_bounds = array<i64: 128, 128>}, {pipeline_mode = #tpu.pipeline_mode<synchronous>, transform_indices = @transform_5, window_bounds = array<i64: 1, 128>}, {pipeline_mode = #tpu.pipeline_mode<synchronous>, transform_indices = @transform_6, window_bounds = array<i64: 128, 128>}, {pipeline_mode = #tpu.pipeline_mode<synchronous>, transform_indices = @transform_7, window_bounds = array<i64: 1, 128>}, {pipeline_mode = #tpu.pipeline_mode<synchronous>, transform_indices = @transform_8, window_bounds = array<i64: 128, 128>}, {pipeline_mode = #tpu.pipeline_mode<synchronous>, transform_indices = @transform_9, window_bounds = array<i64: 1, 128>}, {transform_indices = @transform_10, window_bounds = array<i64: 1, 2, 128>}, {transform_indices = @transform_11, window_bounds = array<i64: 1, 2, 128>}]} {
    %c0 = arith.constant 0 : index
    %c0_0 = arith.constant 0 : index
    %c0_1 = arith.constant 0 : index
    %c0_2 = arith.constant 0 : index
    %0 = vector.load %arg1[%c0, %c0_0, %c0_1, %c0_2] : memref<1x2x256x128xbf16, #tpu.memory_space<vmem>>, vector<1x2x256x128xbf16>
    %1 = vector.shape_cast %0 : vector<1x2x256x128xbf16> to vector<2x256x128xbf16>
    %2 = vector.shape_cast %1 : vector<2x256x128xbf16> to vector<512x128xbf16>
    %c0_3 = arith.constant 0 : index
    %c0_4 = arith.constant 0 : index
    %3 = vector.load %arg3[%c0_3, %c0_4] : memref<128x128xbf16, #tpu.memory_space<vmem>>, vector<128x128xbf16>
    %cst = arith.constant dense<0.000000e+00> : vector<512x128xf32>
    %4 = tpu.matmul %2, %3, %cst {dimension_numbers = #tpu.dot_dimension_numbers<[1], [0], [0], [1], [0, 0, 1, 1], [], []>} : vector<512x128xbf16>, vector<128x128xbf16>, vector<512x128xf32> -> vector<512x128xf32>
    %c0_5 = arith.constant 0 : index
    %c0_6 = arith.constant 0 : index
    %5 = vector.load %arg4[%c0_5, %c0_6] : memref<1x128xf32, #tpu.memory_space<vmem>>, vector<1x128xf32>
    %6 = vector.broadcast %5 : vector<1x128xf32> to vector<512x128xf32>
    %7 = arith.addf %4, %6 : vector<512x128xf32>
    %cst_7 = arith.constant 0.000000e+00 : f32
    %8 = vector.broadcast %cst_7 : f32 to vector<512x128xf32>
    %9 = arith.maximumf %7, %8 : vector<512x128xf32>
    %c0_8 = arith.constant 0 : index
    %c0_9 = arith.constant 0 : index
    %10 = vector.load %arg2[%c0_8, %c0_9] : memref<2x512xf32, #tpu.memory_space<vmem>>, vector<2x512xf32>
    %cst_10 = arith.constant dense<0.000000e+00> : vector<2x128xf32>
    %11 = tpu.matmul %10, %9, %cst_10 {dimension_numbers = #tpu.dot_dimension_numbers<[1], [0], [0], [1], [0, 0, 1, 1], [], []>} : vector<2x512xf32>, vector<512x128xf32>, vector<2x128xf32> -> vector<2x128xf32>
    %c0_11 = arith.constant 0 : index
    %c0_12 = arith.constant 0 : index
    %12 = vector.load %arg5[%c0_11, %c0_12] : memref<128x128xf32, #tpu.memory_space<vmem>>, vector<128x128xf32>
    %cst_13 = arith.constant dense<0.000000e+00> : vector<2x128xf32>
    %13 = tpu.matmul %11, %12, %cst_13 {dimension_numbers = #tpu.dot_dimension_numbers<[1], [0], [0], [1], [0, 0, 1, 1], [], []>} : vector<2x128xf32>, vector<128x128xf32>, vector<2x128xf32> -> vector<2x128xf32>
    %c0_14 = arith.constant 0 : index
    %c0_15 = arith.constant 0 : index
    %14 = vector.load %arg6[%c0_14, %c0_15] : memref<1x128xf32, #tpu.memory_space<vmem>>, vector<1x128xf32>
    %15 = vector.broadcast %14 : vector<1x128xf32> to vector<2x128xf32>
    %16 = arith.addf %13, %15 : vector<2x128xf32>
    %c0_16 = arith.constant 0 : index
    %c0_17 = arith.constant 0 : index
    %c0_18 = arith.constant 0 : index
    %17 = vector.load %arg11[%c0_16, %c0_17, %c0_18] : memref<1x2x128xf32, #tpu.memory_space<vmem>>, vector<1x2x128xf32>
    %18 = vector.shape_cast %17 : vector<1x2x128xf32> to vector<2x128xf32>
    %19 = vector.shape_cast %16 : vector<2x128xf32> to vector<1x2x128xf32>
    tpu.vector_store %arg11[%c0_16, %c0_17, %c0_18], %19 {strides = array<i32>} : memref<1x2x128xf32, #tpu.memory_space<vmem>>, vector<1x2x128xf32>,
    %c0_19 = arith.constant 0 : index
    %c0_20 = arith.constant 0 : index
    %20 = vector.load %arg7[%c0_19, %c0_20] : memref<128x128xf32, #tpu.memory_space<vmem>>, vector<128x128xf32>
    %cst_21 = arith.constant dense<0.000000e+00> : vector<2x128xf32>
    %21 = tpu.matmul %16, %20, %cst_21 {dimension_numbers = #tpu.dot_dimension_numbers<[1], [0], [0], [1], [0, 0, 1, 1], [], []>} : vector<2x128xf32>, vector<128x128xf32>, vector<2x128xf32> -> vector<2x128xf32>
    %c0_22 = arith.constant 0 : index
    %c0_23 = arith.constant 0 : index
    %22 = vector.load %arg8[%c0_22, %c0_23] : memref<1x128xf32, #tpu.memory_space<vmem>>, vector<1x128xf32>
    %23 = vector.broadcast %22 : vector<1x128xf32> to vector<2x128xf32>
    %24 = arith.addf %21, %23 : vector<2x128xf32>
    %cst_24 = arith.constant 0.000000e+00 : f32
    %25 = vector.broadcast %cst_24 : f32 to vector<2x128xf32>
    %26 = arith.maximumf %24, %25 : vector<2x128xf32>
    %c0_25 = arith.constant 0 : index
    %c0_26 = arith.constant 0 : index
    %27 = vector.load %arg9[%c0_25, %c0_26] : memref<128x128xf32, #tpu.memory_space<vmem>>, vector<128x128xf32>
    %cst_27 = arith.constant dense<0.000000e+00> : vector<2x128xf32>
    %28 = tpu.matmul %26, %27, %cst_27 {dimension_numbers = #tpu.dot_dimension_numbers<[1], [0], [0], [1], [0, 0, 1, 1], [], []>} : vector<2x128xf32>, vector<128x128xf32>, vector<2x128xf32> -> vector<2x128xf32>
    %c0_28 = arith.constant 0 : index
    %c0_29 = arith.constant 0 : index
    %29 = vector.load %arg10[%c0_28, %c0_29] : memref<1x128xf32, #tpu.memory_space<vmem>>, vector<1x128xf32>
    %30 = vector.broadcast %29 : vector<1x128xf32> to vector<2x128xf32>
    %31 = arith.addf %28, %30 : vector<2x128xf32>
    %cst_30 = arith.constant -13.8155107 : f32
    %32 = vector.broadcast %cst_30 : f32 to vector<2x128xf32>
    %33 = arith.maximumf %31, %32 : vector<2x128xf32>
    %cst_31 = arith.constant -13.8155107 : f32
    %34 = vector.broadcast %cst_31 : f32 to vector<2x128xf32>
    %35 = arith.subf %34, %33 : vector<2x128xf32>
    %36 = math.exp %35 : vector<2x128xf32>
    %37 = arith.subf %31, %33 : vector<2x128xf32>
    %38 = math.exp %37 : vector<2x128xf32>
    %39 = arith.addf %36, %38 : vector<2x128xf32>
    %40 = math.log %39 : vector<2x128xf32>
    %41 = arith.addf %33, %40 : vector<2x128xf32>
    %c0_32 = arith.constant 0 : index
    %c0_33 = arith.constant 0 : index
    %c0_34 = arith.constant 0 : index
    %42 = vector.load %arg12[%c0_32, %c0_33, %c0_34] : memref<1x2x128xf32, #tpu.memory_space<vmem>>, vector<1x2x128xf32>
    %43 = vector.shape_cast %42 : vector<1x2x128xf32> to vector<2x128xf32>
    %44 = vector.shape_cast %41 : vector<2x128xf32> to vector<1x2x128xf32>
    tpu.vector_store %arg12[%c0_32, %c0_33, %c0_34], %44 {strides = array<i32>} : memref<1x2x128xf32, #tpu.memory_space<vmem>>, vector<1x2x128xf32>,
    return
  }
  func.func @transform_0(%arg0: i32) -> (i32, i32, i32, i32) {
    %c0_i32 = arith.constant 0 : i32
    %c0_i32_0 = arith.constant 0 : i32
    %c0_i32_1 = arith.constant 0 : i32
    %c0_i32_2 = arith.constant 0 : i32
    return %arg0, %c0_i32, %c0_i32_0, %c0_i32_1 : i32, i32, i32, i32
  }
  func.func @transform_1(%arg0: i32) -> (i32, i32) {
    %c0_i32 = arith.constant 0 : i32
    %c0_i32_0 = arith.constant 0 : i32
    %c0_i32_1 = arith.constant 0 : i32
    return %c0_i32, %c0_i32_0 : i32, i32
  }
  func.func @transform_2(%arg0: i32) -> (i32, i32) {
    %c0_i32 = arith.constant 0 : i32
    %c0_i32_0 = arith.constant 0 : i32
    %c0_i32_1 = arith.constant 0 : i32
    return %c0_i32, %c0_i32_0 : i32, i32
  }
  func.func @transform_3(%arg0: i32) -> (i32, i32) {
    %c0_i32 = arith.constant 0 : i32
    %c0_i32_0 = arith.constant 0 : i32
    %c0_i32_1 = arith.constant 0 : i32
    return %c0_i32, %c0_i32_0 : i32, i32
  }
  func.func @transform_4(%arg0: i32) -> (i32, i32) {
    %c0_i32 = arith.constant 0 : i32
    %c0_i32_0 = arith.constant 0 : i32
    %c0_i32_1 = arith.constant 0 : i32
    return %c0_i32, %c0_i32_0 : i32, i32
  }
  func.func @transform_5(%arg0: i32) -> (i32, i32) {
    %c0_i32 = arith.constant 0 : i32
    %c0_i32_0 = arith.constant 0 : i32
    %c0_i32_1 = arith.constant 0 : i32
    return %c0_i32, %c0_i32_0 : i32, i32
  }
  func.func @transform_6(%arg0: i32) -> (i32, i32) {
    %c0_i32 = arith.constant 0 : i32
    %c0_i32_0 = arith.constant 0 : i32
    %c0_i32_1 = arith.constant 0 : i32
    return %c0_i32, %c0_i32_0 : i32, i32
  }
  func.func @transform_7(%arg0: i32) -> (i32, i32) {
    %c0_i32 = arith.constant 0 : i32
    %c0_i32_0 = arith.constant 0 : i32
    %c0_i32_1 = arith.constant 0 : i32
    return %c0_i32, %c0_i32_0 : i32, i32
  }
  func.func @transform_8(%arg0: i32) -> (i32, i32) {
    %c0_i32 = arith.constant 0 : i32
    %c0_i32_0 = arith.constant 0 : i32
    %c0_i32_1 = arith.constant 0 : i32
    return %c0_i32, %c0_i32_0 : i32, i32
  }
  func.func @transform_9(%arg0: i32) -> (i32, i32) {
    %c0_i32 = arith.constant 0 : i32
    %c0_i32_0 = arith.constant 0 : i32
    %c0_i32_1 = arith.constant 0 : i32
    return %c0_i32, %c0_i32_0 : i32, i32
  }
  func.func @transform_10(%arg0: i32) -> (i32, i32, i32) {
    %c0_i32 = arith.constant 0 : i32
    %c0_i32_0 = arith.constant 0 : i32
    %c0_i32_1 = arith.constant 0 : i32
    return %arg0, %c0_i32, %c0_i32_0 : i32, i32, i32
  }
  func.func @transform_11(%arg0: i32) -> (i32, i32, i32) {
    %c0_i32 = arith.constant 0 : i32
    %c0_i32_0 = arith.constant 0 : i32
    %c0_i32_1 = arith.constant 0 : i32
    return %arg0, %c0_i32, %c0_i32_0 : i32, i32, i32
  }
}

</mosaic_0001>

<llo_original>
// kernel: _pfe_forward_impl.1
$region0: #{_pfe_forward_impl.1}
  #allocation0 [shape = 'u32[]', space=smem, size = 0x4, offset = 0x4, fixed_abs, tag = 'smem constant byte address 0x4 - core index']
  #allocation1 [shape = 'u32[144,128]{1,0:T(1,128)}', space=vmem, size = 0x12000, scoped, tag = 'internal scratch']
  %s0 = inlined_call_operand.vmem [shape: bf16[1,2,256,128], index: 0, kind: input, shape index: {}]
  %s1 = inlined_call_operand.vmem [shape: f32[2,512], index: 1, kind: input, shape index: {}]
  %s2 = inlined_call_operand.vmem [shape: bf16[128,128], index: 2, kind: input, shape index: {}]
  %s3 = inlined_call_operand.vmem [shape: f32[1,128], index: 3, kind: input, shape index: {}]
  %s4 = inlined_call_operand.vmem [shape: f32[128,128], index: 4, kind: input, shape index: {}]
  %s5 = inlined_call_operand.vmem [shape: f32[1,128], index: 5, kind: input, shape index: {}]
  %s6 = inlined_call_operand.vmem [shape: f32[128,128], index: 6, kind: input, shape index: {}]
  %s7 = inlined_call_operand.vmem [shape: f32[1,128], index: 7, kind: input, shape index: {}]
  %s8 = inlined_call_operand.vmem [shape: f32[128,128], index: 8, kind: input, shape index: {}]
  %s9 = inlined_call_operand.vmem [shape: f32[1,128], index: 9, kind: input, shape index: {}]
  %s10 = inlined_call_operand.hbm [shape: f32[1,2,128], index: 10, kind: output, shape index: {0}]
  %s11 = inlined_call_operand.hbm [shape: f32[1,2,128], index: 11, kind: output, shape index: {1}]
  %12 = xla_tuple %s10, %s11
  %s13 = sld [smem:[#allocation0]]
  $region58: #{_pfe_forward_impl.1} parent=0
    _
  %s15 = ssub.s32 1, %s13
  %s16 = scalar_select 0, %s15, %s13
  $region1: #{_pfe_forward_impl.1} parent=0
    #allocation2 [shape = 'u8[1024]{0}', space=vmem, size = 0x400, scoped, tag = 'output window, operand 0, single buffered']
    #allocation3 [shape = 's32[1]{0}', space=sflag, size = 0x4, scoped, tag = 'scoped memory for _pfe_forward_impl.1']
    #allocation4 [shape = 'u8[1024]{0}', space=vmem, size = 0x400, scoped, tag = 'output window, operand 1, single buffered']
    #allocation5 [shape = 's32[1]{0}', space=sflag, size = 0x4, scoped, tag = 'scoped memory for _pfe_forward_impl.1']
    %17 = vsyncpa [#allocation3], 0
    %18 = vsyncpa [#allocation5], 0
    // Predicated region
    $region2: #{_pfe_forward_impl.1} parent=1 // pred_check
      _
    $region3: #{_pfe_forward_impl.1} parent=1 // pred_check_branch
      %20 = sbr.rel (0) target = $region5
    $region4: #{_pfe_forward_impl.1} parent=1 // pred_region
      _
    $region5: #{_pfe_forward_impl.1} parent=1 // pred_fallthru
      _
    // Predicated region
    $region6: #{_pfe_forward_impl.1} parent=1 // pred_check
      _
    $region7: #{_pfe_forward_impl.1} parent=1 // pred_check_branch
      %22 = sbr.rel (0) target = $region9
    $region8: #{_pfe_forward_impl.1} parent=1 // pred_region
      _
    $region9: #{_pfe_forward_impl.1} parent=1 // pred_fallthru
      _
    // Predicated region
    $region10: #{_pfe_forward_impl.1} parent=1 // pred_check
      _
    $region11: #{_pfe_forward_impl.1} parent=1 // pred_check_branch
      %24 = sbr.rel (0) target = $region13
    $region12: #{_pfe_forward_impl.1} parent=1 // pred_region
      _
    $region13: #{_pfe_forward_impl.1} parent=1 // pred_fallthru
      _
    // Predicated region
    $region14: #{_pfe_forward_impl.1} parent=1 // pred_check
      _
    $region15: #{_pfe_forward_impl.1} parent=1 // pred_check_branch
      %26 = sbr.rel (0) target = $region17
    $region16: #{_pfe_forward_impl.1} parent=1 // pred_region
      _
    $region17: #{_pfe_forward_impl.1} parent=1 // pred_fallthru
      _
    // Predicated region
    $region18: #{_pfe_forward_impl.1} parent=1 // pred_check
      _
    $region19: #{_pfe_forward_impl.1} parent=1 // pred_check_branch
      %28 = sbr.rel (0) target = $region21
    $region20: #{_pfe_forward_impl.1} parent=1 // pred_region
      _
    $region21: #{_pfe_forward_impl.1} parent=1 // pred_fallthru
      _
    // Predicated region
    $region22: #{_pfe_forward_impl.1} parent=1 // pred_check
      _
    $region23: #{_pfe_forward_impl.1} parent=1 // pred_check_branch
      %30 = sbr.rel (0) target = $region25
    $region24: #{_pfe_forward_impl.1} parent=1 // pred_region
      _
    $region25: #{_pfe_forward_impl.1} parent=1 // pred_fallthru
      _
    // Predicated region
    $region26: #{_pfe_forward_impl.1} parent=1 // pred_check
      _
    $region27: #{_pfe_forward_impl.1} parent=1 // pred_check_branch
      %32 = sbr.rel (0) target = $region29
    $region28: #{_pfe_forward_impl.1} parent=1 // pred_region
      _
    $region29: #{_pfe_forward_impl.1} parent=1 // pred_fallthru
      _
    // Predicated region
    $region30: #{_pfe_forward_impl.1} parent=1 // pred_check
      _
    $region31: #{_pfe_forward_impl.1} parent=1 // pred_check_branch
      %34 = sbr.rel (0) target = $region33
    $region32: #{_pfe_forward_impl.1} parent=1 // pred_region
      _
    $region33: #{_pfe_forward_impl.1} parent=1 // pred_fallthru
      _
    // Predicated region
    $region34: #{_pfe_forward_impl.1} parent=1 // pred_check
      _
    $region35: #{_pfe_forward_impl.1} parent=1 // pred_check_branch
      %36 = sbr.rel (0) target = $region37
    $region36: #{_pfe_forward_impl.1} parent=1 // pred_region
      _
    $region37: #{_pfe_forward_impl.1} parent=1 // pred_fallthru
      _
    // Predicated region
    $region38: #{_pfe_forward_impl.1} parent=1 // pred_check
      _
    $region39: #{_pfe_forward_impl.1} parent=1 // pred_check_branch
      %38 = sbr.rel (0) target = $region41
    $region40: #{_pfe_forward_impl.1} parent=1 // pred_region
      _
    $region41: #{_pfe_forward_impl.1} parent=1 // pred_fallthru
      _
    %v40 = vld [vmem:[%s0] sm:$0xf]
    %v41 = vld [vmem:[%s0 + $0x4] sm:$0xf]
    %v42 = vld [vmem:[%s0 + $0x8] sm:$0xf]
    %v43 = vld [vmem:[%s0 + $0xc] sm:$0xf]
    %v44 = vld [vmem:[%s0 + $0x10] sm:$0xf]
    %v45 = vld [vmem:[%s0 + $0x14] sm:$0xf]
    %v46 = vld [vmem:[%s0 + $0x18] sm:$0xf]
    %v47 = vld [vmem:[%s0 + $0x1c] sm:$0xf]
    %v48 = vld [vmem:[%s0 + $0x20] sm:$0xf]
    %v49 = vld [vmem:[%s0 + $0x24] sm:$0xf]
    %v50 = vld [vmem:[%s0 + $0x28] sm:$0xf]
    %v51 = vld [vmem:[%s0 + $0x2c] sm:$0xf]
    %v52 = vld [vmem:[%s0 + $0x30] sm:$0xf]
    %v53 = vld [vmem:[%s0 + $0x34] sm:$0xf]
    %v54 = vld [vmem:[%s0 + $0x38] sm:$0xf]
    %v55 = vld [vmem:[%s0 + $0x3c] sm:$0xf]
    %v56 = vld [vmem:[%s0 + $0x40] sm:$0xf]
    %v57 = vld [vmem:[%s0 + $0x44] sm:$0xf]
    %v58 = vld [vmem:[%s0 + $0x48] sm:$0xf]
    %v59 = vld [vmem:[%s0 + $0x4c] sm:$0xf]
    %v60 = vld [vmem:[%s0 + $0x50] sm:$0xf]
    %v61 = vld [vmem:[%s0 + $0x54] sm:$0xf]
    %v62 = vld [vmem:[%s0 + $0x58] sm:$0xf]
    %v63 = vld [vmem:[%s0 + $0x5c] sm:$0xf]
    %v64 = vld [vmem:[%s0 + $0x60] sm:$0xf]
    %v65 = vld [vmem:[%s0 + $0x64] sm:$0xf]
    %v66 = vld [vmem:[%s0 + $0x68] sm:$0xf]
    %v67 = vld [vmem:[%s0 + $0x6c] sm:$0xf]
    %v68 = vld [vmem:[%s0 + $0x70] sm:$0xf]
    %v69 = vld [vmem:[%s0 + $0x74] sm:$0xf]
    %v70 = vld [vmem:[%s0 + $0x78] sm:$0xf]
    %v71 = vld [vmem:[%s0 + $0x7c] sm:$0xf]
    %v72 = vld [vmem:[%s0 + $0x80] sm:$0xf]
    %v73 = vld [vmem:[%s0 + $0x84] sm:$0xf]
    %v74 = vld [vmem:[%s0 + $0x88] sm:$0xf]
    %v75 = vld [vmem:[%s0 + $0x8c] sm:$0xf]
    %v76 = vld [vmem:[%s0 + $0x90] sm:$0xf]
    %v77 = vld [vmem:[%s0 + $0x94] sm:$0xf]
    %v78 = vld [vmem:[%s0 + $0x98] sm:$0xf]
    %v79 = vld [vmem:[%s0 + $0x9c] sm:$0xf]
    %v80 = vld [vmem:[%s0 + $0xa0] sm:$0xf]
    %v81 = vld [vmem:[%s0 + $0xa4] sm:$0xf]
    %v82 = vld [vmem:[%s0 + $0xa8] sm:$0xf]
    %v83 = vld [vmem:[%s0 + $0xac] sm:$0xf]
    %v84 = vld [vmem:[%s0 + $0xb0] sm:$0xf]
    %v85 = vld [vmem:[%s0 + $0xb4] sm:$0xf]
    %v86 = vld [vmem:[%s0 + $0xb8] sm:$0xf]
    %v87 = vld [vmem:[%s0 + $0xbc] sm:$0xf]
    %v88 = vld [vmem:[%s0 + $0xc0] sm:$0xf]
    %v89 = vld [vmem:[%s0 + $0xc4] sm:$0xf]
    %v90 = vld [vmem:[%s0 + $0xc8] sm:$0xf]
    %v91 = vld [vmem:[%s0 + $0xcc] sm:$0xf]
    %v92 = vld [vmem:[%s0 + $0xd0] sm:$0xf]
    %v93 = vld [vmem:[%s0 + $0xd4] sm:$0xf]
    %v94 = vld [vmem:[%s0 + $0xd8] sm:$0xf]
    %v95 = vld [vmem:[%s0 + $0xdc] sm:$0xf]
    %v96 = vld [vmem:[%s0 + $0xe0] sm:$0xf]
    %v97 = vld [vmem:[%s0 + $0xe4] sm:$0xf]
    %v98 = vld [vmem:[%s0 + $0xe8] sm:$0xf]
    %v99 = vld [vmem:[%s0 + $0xec] sm:$0xf]
    %v100 = vld [vmem:[%s0 + $0xf0] sm:$0xf]
    %v101 = vld [vmem:[%s0 + $0xf4] sm:$0xf]
    %v102 = vld [vmem:[%s0 + $0xf8] sm:$0xf]
    %v103 = vld [vmem:[%s0 + $0xfc] sm:$0xf]
    %v104 = vld [vmem:[%s2] sm:$0xf]
    %v105 = vld [vmem:[%s2 + $0x4] sm:$0xf]
    %v106 = vld [vmem:[%s2 + $0x8] sm:$0xf]
    %v107 = vld [vmem:[%s2 + $0xc] sm:$0xf]
    %v108 = vld [vmem:[%s2 + $0x10] sm:$0xf]
    %v109 = vld [vmem:[%s2 + $0x14] sm:$0xf]
    %v110 = vld [vmem:[%s2 + $0x18] sm:$0xf]
    %v111 = vld [vmem:[%s2 + $0x1c] sm:$0xf]
    %v112 = vld [vmem:[%s2 + $0x20] sm:$0xf]
    %v113 = vld [vmem:[%s2 + $0x24] sm:$0xf]
    %v114 = vld [vmem:[%s2 + $0x28] sm:$0xf]
    %v115 = vld [vmem:[%s2 + $0x2c] sm:$0xf]
    %v116 = vld [vmem:[%s2 + $0x30] sm:$0xf]
    %v117 = vld [vmem:[%s2 + $0x34] sm:$0xf]
    %v118 = vld [vmem:[%s2 + $0x38] sm:$0xf]
    %v119 = vld [vmem:[%s2 + $0x3c] sm:$0xf]
    %v120 = vld [vmem:[%s3] sm:$0x1]
    %v122 = vlaneseq
    %v123 = vshrl.u32 %v122, 7
    %v124 = vsub.s32 0, %v123
    %v125 = vrot.slane %v120, %v124
    %v191 = vunpack.c.l.b16 %v40
    %v192 = vunpack.c.l.b16 %v41
    %v193 = vunpack.c.l.b16 %v42
    %v194 = vunpack.c.l.b16 %v43
    %v195 = vunpack.c.l.b16 %v44
    %v196 = vunpack.c.l.b16 %v45
    %v197 = vunpack.c.l.b16 %v46
    %v198 = vunpack.c.l.b16 %v47
    %v199 = vunpack.c.l.b16 %v48
    %v200 = vunpack.c.l.b16 %v49
    %v201 = vunpack.c.l.b16 %v50
    %v202 = vunpack.c.l.b16 %v51
    %v203 = vunpack.c.l.b16 %v52
    %v204 = vunpack.c.l.b16 %v53
    %v205 = vunpack.c.l.b16 %v54
    %v206 = vunpack.c.l.b16 %v55
    %v207 = vunpack.c.l.b16 %v56
    %v208 = vunpack.c.l.b16 %v57
    %v209 = vunpack.c.l.b16 %v58
    %v210 = vunpack.c.l.b16 %v59
    %v211 = vunpack.c.l.b16 %v60
    %v212 = vunpack.c.l.b16 %v61
    %v213 = vunpack.c.l.b16 %v62
    %v214 = vunpack.c.l.b16 %v63
    %v215 = vunpack.c.l.b16 %v64
    %v216 = vunpack.c.l.b16 %v65
    %v217 = vunpack.c.l.b16 %v66
    %v218 = vunpack.c.l.b16 %v67
    %v219 = vunpack.c.l.b16 %v68
    %v220 = vunpack.c.l.b16 %v69
    %v221 = vunpack.c.l.b16 %v70
    %v222 = vunpack.c.l.b16 %v71
    %v223 = vunpack.c.l.b16 %v72
    %v224 = vunpack.c.l.b16 %v73
    %v225 = vunpack.c.l.b16 %v74
    %v226 = vunpack.c.l.b16 %v75
    %v227 = vunpack.c.l.b16 %v76
    %v228 = vunpack.c.l.b16 %v77
    %v229 = vunpack.c.l.b16 %v78
    %v230 = vunpack.c.l.b16 %v79
    %v231 = vunpack.c.l.b16 %v80
    %v232 = vunpack.c.l.b16 %v81
    %v233 = vunpack.c.l.b16 %v82
    %v234 = vunpack.c.l.b16 %v83
    %v235 = vunpack.c.l.b16 %v84
    %v236 = vunpack.c.l.b16 %v85
    %v237 = vunpack.c.l.b16 %v86
    %v238 = vunpack.c.l.b16 %v87
    %v239 = vunpack.c.l.b16 %v88
    %v240 = vunpack.c.l.b16 %v89
    %v241 = vunpack.c.l.b16 %v90
    %v242 = vunpack.c.l.b16 %v91
    %v243 = vunpack.c.l.b16 %v92
    %v244 = vunpack.c.l.b16 %v93
    %v245 = vunpack.c.l.b16 %v94
    %v246 = vunpack.c.l.b16 %v95
    %v247 = vunpack.c.l.b16 %v96
    %v248 = vunpack.c.l.b16 %v97
    %v249 = vunpack.c.l.b16 %v98
    %v250 = vunpack.c.l.b16 %v99
    %v251 = vunpack.c.l.b16 %v100
    %v252 = vunpack.c.l.b16 %v101
    %v253 = vunpack.c.l.b16 %v102
    %v254 = vunpack.c.l.b16 %v103
    %v255 = vpack.c.b16 %v192, %v191
    %v256 = vpack.c.b16 %v194, %v193
    %v257 = vpack.c.b16 %v196, %v195
    %v258 = vpack.c.b16 %v198, %v197
    %v259 = vpack.c.b16 %v200, %v199
    %v260 = vpack.c.b16 %v202, %v201
    %v261 = vpack.c.b16 %v204, %v203
    %v262 = vpack.c.b16 %v206, %v205
    %v263 = vpack.c.b16 %v208, %v207
    %v264 = vpack.c.b16 %v210, %v209
    %v265 = vpack.c.b16 %v212, %v211
    %v266 = vpack.c.b16 %v214, %v213
    %v267 = vpack.c.b16 %v216, %v215
    %v268 = vpack.c.b16 %v218, %v217
    %v269 = vpack.c.b16 %v220, %v219
    %v270 = vpack.c.b16 %v222, %v221
    %v271 = vpack.c.b16 %v224, %v223
    %v272 = vpack.c.b16 %v226, %v225
    %v273 = vpack.c.b16 %v228, %v227
    %v274 = vpack.c.b16 %v230, %v229
    %v275 = vpack.c.b16 %v232, %v231
    %v276 = vpack.c.b16 %v234, %v233
    %v277 = vpack.c.b16 %v236, %v235
    %v278 = vpack.c.b16 %v238, %v237
    %v279 = vpack.c.b16 %v240, %v239
    %v280 = vpack.c.b16 %v242, %v241
    %v281 = vpack.c.b16 %v244, %v243
    %v282 = vpack.c.b16 %v246, %v245
    %v283 = vpack.c.b16 %v248, %v247
    %v284 = vpack.c.b16 %v250, %v249
    %v285 = vpack.c.b16 %v252, %v251
    %v286 = vpack.c.b16 %v254, %v253
    %v335 = vunpack.c.l.b16 %v104
    %v336 = vunpack.c.l.b16 %v105
    %v337 = vunpack.c.l.b16 %v106
    %v338 = vunpack.c.l.b16 %v107
    %v339 = vunpack.c.l.b16 %v108
    %v340 = vunpack.c.l.b16 %v109
    %v341 = vunpack.c.l.b16 %v110
    %v342 = vunpack.c.l.b16 %v111
    %v343 = vunpack.c.l.b16 %v112
    %v344 = vunpack.c.l.b16 %v113
    %v345 = vunpack.c.l.b16 %v114
    %v346 = vunpack.c.l.b16 %v115
    %v347 = vunpack.c.l.b16 %v116
    %v348 = vunpack.c.l.b16 %v117
    %v349 = vunpack.c.l.b16 %v118
    %v350 = vunpack.c.l.b16 %v119
    %v351 = vpack.c.b16 %v336, %v335
    %v352 = vpack.c.b16 %v338, %v337
    %v353 = vpack.c.b16 %v340, %v339
    %v354 = vpack.c.b16 %v342, %v341
    %v355 = vpack.c.b16 %v344, %v343
    %v356 = vpack.c.b16 %v346, %v345
    %v357 = vpack.c.b16 %v348, %v347
    %v358 = vpack.c.b16 %v350, %v349
    %367 = vmatprep.subr.bf16.mxu0 0
    %368 = vmatpush1.bf16.msra.mxu0 %v351
    %369 = vmatprep.subr.bf16.mxu0 0
    %370 = vmatpush1.bf16.msra.mxu0 %v352
    %371 = vmatprep.subr.bf16.mxu0 0
    %372 = vmatpush1.bf16.msra.mxu0 %v353
    %373 = vmatprep.subr.bf16.mxu0 0
    %374 = vmatpush1.bf16.msra.mxu0 %v354
    %375 = vmatprep.subr.bf16.mxu0 0
    %376 = vmatpush1.bf16.msra.mxu0 %v355
    %377 = vmatprep.subr.bf16.mxu0 0
    %378 = vmatpush1.bf16.msra.mxu0 %v356
    %379 = vmatprep.subr.bf16.mxu0 0
    %380 = vmatpush1.bf16.msra.mxu0 %v357
    %381 = vmatprep.subr.bf16.mxu0 0
    %382 = vmatpush1.bf16.msra.mxu0 %v358
    %383 = vmatprep.subr.bf16.mxu0 0
    %384 = vmatpush1.bf16.msra.mxu0 0
    %385 = vmatprep.subr.bf16.mxu0 0
    %386 = vmatpush1.bf16.msra.mxu0 0
    %387 = vmatprep.subr.bf16.mxu0 0
    %388 = vmatpush1.bf16.msra.mxu0 0
    %389 = vmatprep.subr.bf16.mxu0 0
    %390 = vmatpush1.bf16.msra.mxu0 0
    %391 = vmatprep.subr.bf16.mxu0 0
    %392 = vmatpush1.bf16.msra.mxu0 0
    %393 = vmatprep.subr.bf16.mxu0 0
    %394 = vmatpush1.bf16.msra.mxu0 0
    %395 = vmatprep.subr.bf16.mxu0 0
    %396 = vmatpush1.bf16.msra.mxu0 0
    %397 = vmatprep.subr.bf16.mxu0 0
    %398 = vmatpush1.bf16.msra.mxu0 0
    %399 = vmatprep.mubr.bf16.mxu0 0
    %400 = vmatmul.mubr.bf16.gmra.mrb[0].mxu0 %v255
    %v401 = vpop.f32.mrb[0].mxu0
    %v402 = vadd.f32 %v125, %v401
    %v403 = vpop.f32.mrb[0].mxu0
    %v404 = vpop.f32.mrb[0].mxu0
    %v405 = vadd.f32 %v125, %v404
    %v406 = vpop.f32.mrb[0].mxu0
    %407 = vmatprep.mubr.bf16.mxu0 0
    %408 = vmatmul.mubr.bf16.gmra.mrb[0].mxu0 %v256
    %v409 = vpop.f32.mrb[0].mxu0
    %v410 = vadd.f32 %v125, %v409
    %v411 = vpop.f32.mrb[0].mxu0
    %v412 = vpop.f32.mrb[0].mxu0
    %v413 = vadd.f32 %v125, %v412
    %v414 = vpop.f32.mrb[0].mxu0
    %415 = vmatprep.mubr.bf16.mxu0 0
    %416 = vmatmul.mubr.bf16.gmra.mrb[0].mxu0 %v257
    %v417 = vpop.f32.mrb[0].mxu0
    %v418 = vadd.f32 %v125, %v417
    %v419 = vpop.f32.mrb[0].mxu0
    %v420 = vpop.f32.mrb[0].mxu0
    %v421 = vadd.f32 %v125, %v420
    %v422 = vpop.f32.mrb[0].mxu0
    %423 = vmatprep.mubr.bf16.mxu0 0
    %424 = vmatmul.mubr.bf16.gmra.mrb[0].mxu0 %v258
    %v425 = vpop.f32.mrb[0].mxu0
    %v426 = vadd.f32 %v125, %v425
    %v427 = vpop.f32.mrb[0].mxu0
    %v428 = vpop.f32.mrb[0].mxu0
    %v429 = vadd.f32 %v125, %v428
    %v430 = vpop.f32.mrb[0].mxu0
    %431 = vmatprep.mubr.bf16.mxu0 0
    %432 = vmatmul.mubr.bf16.gmra.mrb[0].mxu0 %v259
    %v433 = vpop.f32.mrb[0].mxu0
    %v434 = vadd.f32 %v125, %v433
    %v435 = vpop.f32.mrb[0].mxu0
    %v436 = vpop.f32.mrb[0].mxu0
    %v437 = vadd.f32 %v125, %v436
    %v438 = vpop.f32.mrb[0].mxu0
    %439 = vmatprep.mubr.bf16.mxu0 0
    %440 = vmatmul.mubr.bf16.gmra.mrb[0].mxu0 %v260
    %v441 = vpop.f32.mrb[0].mxu0
    %v442 = vadd.f32 %v125, %v441
    %v443 = vpop.f32.mrb[0].mxu0
    %v444 = vpop.f32.mrb[0].mxu0
    %v445 = vadd.f32 %v125, %v444
    %v446 = vpop.f32.mrb[0].mxu0
    %447 = vmatprep.mubr.bf16.mxu0 0
    %448 = vmatmul.mubr.bf16.gmra.mrb[0].mxu0 %v261
    %v449 = vpop.f32.mrb[0].mxu0
    %v450 = vadd.f32 %v125, %v449
    %v451 = vpop.f32.mrb[0].mxu0
    %v452 = vpop.f32.mrb[0].mxu0
    %v453 = vadd.f32 %v125, %v452
    %v454 = vpop.f32.mrb[0].mxu0
    %455 = vmatprep.mubr.bf16.mxu0 0
    %456 = vmatmul.mubr.bf16.gmra.mrb[0].mxu0 %v262
    %v457 = vpop.f32.mrb[0].mxu0
    %v458 = vadd.f32 %v125, %v457
    %v459 = vpop.f32.mrb[0].mxu0
    %v460 = vpop.f32.mrb[0].mxu0
    %v461 = vadd.f32 %v125, %v460
    %v462 = vpop.f32.mrb[0].mxu0
    %463 = vmatprep.mubr.bf16.mxu0 0
    %464 = vmatmul.mubr.bf16.gmra.mrb[0].mxu0 %v263
    %v465 = vpop.f32.mrb[0].mxu0
    %v466 = vadd.f32 %v125, %v465
    %v467 = vpop.f32.mrb[0].mxu0
    %v468 = vpop.f32.mrb[0].mxu0
    %v469 = vadd.f32 %v125, %v468
    %v470 = vpop.f32.mrb[0].mxu0
    %471 = vmatprep.mubr.bf16.mxu0 0
    %472 = vmatmul.mubr.bf16.gmra.mrb[0].mxu0 %v264
    %v473 = vpop.f32.mrb[0].mxu0
    %v474 = vadd.f32 %v125, %v473
    %v475 = vpop.f32.mrb[0].mxu0
    %v476 = vpop.f32.mrb[0].mxu0
    %v477 = vadd.f32 %v125, %v476
    %v478 = vpop.f32.mrb[0].mxu0
    %479 = vmatprep.mubr.bf16.mxu0 0
    %480 = vmatmul.mubr.bf16.gmra.mrb[0].mxu0 %v265
    %v481 = vpop.f32.mrb[0].mxu0
    %v482 = vadd.f32 %v125, %v481
    %v483 = vpop.f32.mrb[0].mxu0
    %v484 = vpop.f32.mrb[0].mxu0
    %v485 = vadd.f32 %v125, %v484
    %v486 = vpop.f32.mrb[0].mxu0
    %487 = vmatprep.mubr.bf16.mxu0 0
    %488 = vmatmul.mubr.bf16.gmra.mrb[0].mxu0 %v266
    %v489 = vpop.f32.mrb[0].mxu0
    %v490 = vadd.f32 %v125, %v489
    %v491 = vpop.f32.mrb[0].mxu0
    %v492 = vpop.f32.mrb[0].mxu0
    %v493 = vadd.f32 %v125, %v492
    %v494 = vpop.f32.mrb[0].mxu0
    %495 = vmatprep.mubr.bf16.mxu0 0
    %496 = vmatmul.mubr.bf16.gmra.mrb[0].mxu0 %v267
    %v497 = vpop.f32.mrb[0].mxu0
    %v498 = vadd.f32 %v125, %v497
    %v499 = vpop.f32.mrb[0].mxu0
    %v500 = vpop.f32.mrb[0].mxu0
    %v501 = vadd.f32 %v125, %v500
    %v502 = vpop.f32.mrb[0].mxu0
    %503 = vmatprep.mubr.bf16.mxu0 0
    %504 = vmatmul.mubr.bf16.gmra.mrb[0].mxu0 %v268
    %v505 = vpop.f32.mrb[0].mxu0
    %v506 = vadd.f32 %v125, %v505
    %v507 = vpop.f32.mrb[0].mxu0
    %v508 = vpop.f32.mrb[0].mxu0
    %v509 = vadd.f32 %v125, %v508
    %v510 = vpop.f32.mrb[0].mxu0
    %511 = vmatprep.mubr.bf16.mxu0 0
    %512 = vmatmul.mubr.bf16.gmra.mrb[0].mxu0 %v269
    %v513 = vpop.f32.mrb[0].mxu0
    %v514 = vadd.f32 %v125, %v513
    %v515 = vpop.f32.mrb[0].mxu0
    %v516 = vpop.f32.mrb[0].mxu0
    %v517 = vadd.f32 %v125, %v516
    %v518 = vpop.f32.mrb[0].mxu0
    %519 = vmatprep.mubr.bf16.mxu0 0
    %520 = vmatmul.mubr.bf16.gmra.mrb[0].mxu0 %v270
    %v521 = vpop.f32.mrb[0].mxu0
    %v522 = vadd.f32 %v125, %v521
    %v523 = vpop.f32.mrb[0].mxu0
    %v524 = vpop.f32.mrb[0].mxu0
    %v525 = vadd.f32 %v125, %v524
    %v526 = vpop.f32.mrb[0].mxu0
    %527 = vmatprep.mubr.bf16.mxu0 0
    %528 = vmatmul.mubr.bf16.gmra.mrb[0].mxu0 %v271
    %v529 = vpop.f32.mrb[0].mxu0
    %v530 = vadd.f32 %v125, %v529
    %v531 = vpop.f32.mrb[0].mxu0
    %v532 = vpop.f32.mrb[0].mxu0
    %v533 = vadd.f32 %v125, %v532
    %v534 = vpop.f32.mrb[0].mxu0
    %535 = vmatprep.mubr.bf16.mxu0 0
    %536 = vmatmul.mubr.bf16.gmra.mrb[0].mxu0 %v272
    %v537 = vpop.f32.mrb[0].mxu0
    %v538 = vadd.f32 %v125, %v537
    %v539 = vpop.f32.mrb[0].mxu0
    %v540 = vpop.f32.mrb[0].mxu0
    %v541 = vadd.f32 %v125, %v540
    %v542 = vpop.f32.mrb[0].mxu0
    %543 = vmatprep.mubr.bf16.mxu0 0
    %544 = vmatmul.mubr.bf16.gmra.mrb[0].mxu0 %v273
    %v545 = vpop.f32.mrb[0].mxu0
    %v546 = vadd.f32 %v125, %v545
    %v547 = vpop.f32.mrb[0].mxu0
    %v548 = vpop.f32.mrb[0].mxu0
    %v549 = vadd.f32 %v125, %v548
    %v550 = vpop.f32.mrb[0].mxu0
    %551 = vmatprep.mubr.bf16.mxu0 0
    %552 = vmatmul.mubr.bf16.gmra.mrb[0].mxu0 %v274
    %v553 = vpop.f32.mrb[0].mxu0
    %v554 = vadd.f32 %v125, %v553
    %v555 = vpop.f32.mrb[0].mxu0
    %v556 = vpop.f32.mrb[0].mxu0
    %v557 = vadd.f32 %v125, %v556
    %v558 = vpop.f32.mrb[0].mxu0
    %559 = vmatprep.mubr.bf16.mxu0 0
    %560 = vmatmul.mubr.bf16.gmra.mrb[0].mxu0 %v275
    %v561 = vpop.f32.mrb[0].mxu0
    %v562 = vadd.f32 %v125, %v561
    %v563 = vpop.f32.mrb[0].mxu0
    %v564 = vpop.f32.mrb[0].mxu0
    %v565 = vadd.f32 %v125, %v564
    %v566 = vpop.f32.mrb[0].mxu0
    %567 = vmatprep.mubr.bf16.mxu0 0
    %568 = vmatmul.mubr.bf16.gmra.mrb[0].mxu0 %v276
    %v569 = vpop.f32.mrb[0].mxu0
    %v570 = vadd.f32 %v125, %v569
    %v571 = vpop.f32.mrb[0].mxu0
    %v572 = vpop.f32.mrb[0].mxu0
    %v573 = vadd.f32 %v125, %v572
    %v574 = vpop.f32.mrb[0].mxu0
    %575 = vmatprep.mubr.bf16.mxu0 0
    %576 = vmatmul.mubr.bf16.gmra.mrb[0].mxu0 %v277
    %v577 = vpop.f32.mrb[0].mxu0
    %v578 = vadd.f32 %v125, %v577
    %v579 = vpop.f32.mrb[0].mxu0
    %v580 = vpop.f32.mrb[0].mxu0
    %v581 = vadd.f32 %v125, %v580
    %v582 = vpop.f32.mrb[0].mxu0
    %583 = vmatprep.mubr.bf16.mxu0 0
    %584 = vmatmul.mubr.bf16.gmra.mrb[0].mxu0 %v278
    %v585 = vpop.f32.mrb[0].mxu0
    %v586 = vadd.f32 %v125, %v585
    %v587 = vpop.f32.mrb[0].mxu0
    %v588 = vpop.f32.mrb[0].mxu0
    %v589 = vadd.f32 %v125, %v588
    %v590 = vpop.f32.mrb[0].mxu0
    %591 = vmatprep.mubr.bf16.mxu0 0
    %592 = vmatmul.mubr.bf16.gmra.mrb[0].mxu0 %v279
    %v593 = vpop.f32.mrb[0].mxu0
    %v594 = vadd.f32 %v125, %v593
    %v595 = vpop.f32.mrb[0].mxu0
    %v596 = vpop.f32.mrb[0].mxu0
    %v597 = vadd.f32 %v125, %v596
    %v598 = vpop.f32.mrb[0].mxu0
    %599 = vmatprep.mubr.bf16.mxu0 0
    %600 = vmatmul.mubr.bf16.gmra.mrb[0].mxu0 %v280
    %v601 = vpop.f32.mrb[0].mxu0
    %v602 = vadd.f32 %v125, %v601
    %v603 = vpop.f32.mrb[0].mxu0
    %v604 = vpop.f32.mrb[0].mxu0
    %v605 = vadd.f32 %v125, %v604
    %v606 = vpop.f32.mrb[0].mxu0
    %607 = vmatprep.mubr.bf16.mxu0 0
    %608 = vmatmul.mubr.bf16.gmra.mrb[0].mxu0 %v281
    %v609 = vpop.f32.mrb[0].mxu0
    %v610 = vadd.f32 %v125, %v609
    %v611 = vpop.f32.mrb[0].mxu0
    %v612 = vpop.f32.mrb[0].mxu0
    %v613 = vadd.f32 %v125, %v612
    %v614 = vpop.f32.mrb[0].mxu0
    %615 = vmatprep.mubr.bf16.mxu0 0
    %616 = vmatmul.mubr.bf16.gmra.mrb[0].mxu0 %v282
    %v617 = vpop.f32.mrb[0].mxu0
    %v618 = vadd.f32 %v125, %v617
    %v619 = vpop.f32.mrb[0].mxu0
    %v620 = vpop.f32.mrb[0].mxu0
    %v621 = vadd.f32 %v125, %v620
    %v622 = vpop.f32.mrb[0].mxu0
    %623 = vmatprep.mubr.bf16.mxu0 0
    %624 = vmatmul.mubr.bf16.gmra.mrb[0].mxu0 %v283
    %v625 = vpop.f32.mrb[0].mxu0
    %v626 = vadd.f32 %v125, %v625
    %v627 = vpop.f32.mrb[0].mxu0
    %v628 = vpop.f32.mrb[0].mxu0
    %v629 = vadd.f32 %v125, %v628
    %v630 = vpop.f32.mrb[0].mxu0
    %631 = vmatprep.mubr.bf16.mxu0 0
    %632 = vmatmul.mubr.bf16.gmra.mrb[0].mxu0 %v284
    %v633 = vpop.f32.mrb[0].mxu0
    %v634 = vadd.f32 %v125, %v633
    %v635 = vpop.f32.mrb[0].mxu0
    %v636 = vpop.f32.mrb[0].mxu0
    %v637 = vadd.f32 %v125, %v636
    %v638 = vpop.f32.mrb[0].mxu0
    %639 = vmatprep.mubr.bf16.mxu0 0
    %640 = vmatmul.mubr.bf16.gmra.mrb[0].mxu0 %v285
    %v641 = vpop.f32.mrb[0].mxu0
    %v642 = vadd.f32 %v125, %v641
    %v643 = vpop.f32.mrb[0].mxu0
    %v644 = vpop.f32.mrb[0].mxu0
    %v645 = vadd.f32 %v125, %v644
    %v646 = vpop.f32.mrb[0].mxu0
    %647 = vmatprep.mubr.bf16.mxu0 0
    %648 = vmatmul.mubr.bf16.gmra.mrb[0].mxu0 %v286
    %v649 = vpop.f32.mrb[0].mxu0
    %v650 = vadd.f32 %v125, %v649
    %v651 = vpop.f32.mrb[0].mxu0
    %v652 = vpop.f32.mrb[0].mxu0
    %v653 = vadd.f32 %v125, %v652
    %v654 = vpop.f32.mrb[0].mxu0
    %655 = vdwg.mxu0
    %v656 = vmax.f32 %v402, 0.0
    %v657 = vmax.f32 %v405, 0.0
    %v658 = vmax.f32 %v410, 0.0
    %v659 = vmax.f32 %v413, 0.0
    %v660 = vmax.f32 %v418, 0.0
    %v661 = vmax.f32 %v421, 0.0
    %v662 = vmax.f32 %v426, 0.0
    %v663 = vmax.f32 %v429, 0.0
    %v664 = vmax.f32 %v434, 0.0
    %v665 = vmax.f32 %v437, 0.0
    %v666 = vmax.f32 %v442, 0.0
    %v667 = vmax.f32 %v445, 0.0
    %v668 = vmax.f32 %v450, 0.0
    %v669 = vmax.f32 %v453, 0.0
    %v670 = vmax.f32 %v458, 0.0
    %v671 = vmax.f32 %v461, 0.0
    %v672 = vmax.f32 %v466, 0.0
    %v673 = vmax.f32 %v469, 0.0
    %v674 = vmax.f32 %v474, 0.0
    %v675 = vmax.f32 %v477, 0.0
    %v676 = vmax.f32 %v482, 0.0
    %v677 = vmax.f32 %v485, 0.0
    %v678 = vmax.f32 %v490, 0.0
    %v679 = vmax.f32 %v493, 0.0
    %v680 = vmax.f32 %v498, 0.0
    %v681 = vmax.f32 %v501, 0.0
    %v682 = vmax.f32 %v506, 0.0
    %v683 = vmax.f32 %v509, 0.0
    %v684 = vmax.f32 %v514, 0.0
    %v685 = vmax.f32 %v517, 0.0
    %v686 = vmax.f32 %v522, 0.0
    %v687 = vmax.f32 %v525, 0.0
    %v688 = vmax.f32 %v530, 0.0
    %v689 = vmax.f32 %v533, 0.0
    %v690 = vmax.f32 %v538, 0.0
    %v691 = vmax.f32 %v541, 0.0
    %v692 = vmax.f32 %v546, 0.0
    %v693 = vmax.f32 %v549, 0.0
    %v694 = vmax.f32 %v554, 0.0
    %v695 = vmax.f32 %v557, 0.0
    %v696 = vmax.f32 %v562, 0.0
    %v697 = vmax.f32 %v565, 0.0
    %v698 = vmax.f32 %v570, 0.0
    %v699 = vmax.f32 %v573, 0.0
    %v700 = vmax.f32 %v578, 0.0
    %v701 = vmax.f32 %v581, 0.0
    %v702 = vmax.f32 %v586, 0.0
    %v703 = vmax.f32 %v589, 0.0
    %v704 = vmax.f32 %v594, 0.0
    %v705 = vmax.f32 %v597, 0.0
    %v706 = vmax.f32 %v602, 0.0
    %v707 = vmax.f32 %v605, 0.0
    %v708 = vmax.f32 %v610, 0.0
    %v709 = vmax.f32 %v613, 0.0
    %v710 = vmax.f32 %v618, 0.0
    %v711 = vmax.f32 %v621, 0.0
    %v712 = vmax.f32 %v626, 0.0
    %v713 = vmax.f32 %v629, 0.0
    %v714 = vmax.f32 %v634, 0.0
    %v715 = vmax.f32 %v637, 0.0
    %v716 = vmax.f32 %v642, 0.0
    %v717 = vmax.f32 %v645, 0.0
    %v718 = vmax.f32 %v650, 0.0
    %v719 = vmax.f32 %v653, 0.0
    %v720 = vld [vmem:[%s1] sm:$0xff]
    %v722 = vcombine.high %v720, %v720
    %v724 = vunpack.c.l.s4 1983009808
    %v725 = vunpack.c.0.s8 %v724
    %v726 = vlaneseq
    %v727 = vshrl.u32 %v726, 7
    %v728 = vsub.s32 %v725, %v727
    %v729 = vrot.slane %v720, %v728
    %v731 = vunpack.c.l.s4 1983009808
    %v732 = vunpack.c.0.s8 %v731
    %v733 = vlaneseq
    %v734 = vshrl.u32 %v733, 7
    %v735 = vsub.s32 %v732, %v734
    %v736 = vrot.slane %v722, %v735
    %v737 = vcombine.high %v729, %v729
    %v738 = vcombine.high %v736, %v736
    %743 = vmatprep.subr.mxu0 0.0
    %744 = vmatpush1.msra.mxu0 %v656
    %745 = vmatprep.subr.mxu0 0.0
    %746 = vmatpush1.msra.mxu0 %v657
    %747 = vmatprep.subr.mxu0 0.0
    %748 = vmatpush1.msra.mxu0 %v658
    %749 = vmatprep.subr.mxu0 0.0
    %750 = vmatpush1.msra.mxu0 %v659
    %751 = vmatprep.subr.mxu0 0.0
    %752 = vmatpush1.msra.mxu0 %v660
    %753 = vmatprep.subr.mxu0 0.0
    %754 = vmatpush1.msra.mxu0 %v661
    %755 = vmatprep.subr.mxu0 0.0
    %756 = vmatpush1.msra.mxu0 %v662
    %757 = vmatprep.subr.mxu0 0.0
    %758 = vmatpush1.msra.mxu0 %v663
    %759 = vmatprep.subr.mxu0 0.0
    %760 = vmatpush1.msra.mxu0 %v664
    %761 = vmatprep.subr.mxu0 0.0
    %762 = vmatpush1.msra.mxu0 %v665
    %763 = vmatprep.subr.mxu0 0.0
    %764 = vmatpush1.msra.mxu0 %v666
    %765 = vmatprep.subr.mxu0 0.0
    %766 = vmatpush1.msra.mxu0 %v667
    %767 = vmatprep.subr.mxu0 0.0
    %768 = vmatpush1.msra.mxu0 %v668
    %769 = vmatprep.subr.mxu0 0.0
    %770 = vmatpush1.msra.mxu0 %v669
    %771 = vmatprep.subr.mxu0 0.0
    %772 = vmatpush1.msra.mxu0 %v670
    %773 = vmatprep.subr.mxu0 0.0
    %774 = vmatpush1.msra.mxu0 %v671
    %775 = vmatprep.subr.mxu0 0.0
    %776 = vmatpush1.msra.mxu0 %v672
    %777 = vmatprep.subr.mxu0 0.0
    %778 = vmatpush1.msra.mxu0 %v673
    %779 = vmatprep.subr.mxu0 0.0
    %780 = vmatpush1.msra.mxu0 %v674
    %781 = vmatprep.subr.mxu0 0.0
    %782 = vmatpush1.msra.mxu0 %v675
    %783 = vmatprep.subr.mxu0 0.0
    %784 = vmatpush1.msra.mxu0 %v676
    %785 = vmatprep.subr.mxu0 0.0
    %786 = vmatpush1.msra.mxu0 %v677
    %787 = vmatprep.subr.mxu0 0.0
    %788 = vmatpush1.msra.mxu0 %v678
    %789 = vmatprep.subr.mxu0 0.0
    %790 = vmatpush1.msra.mxu0 %v679
    %791 = vmatprep.subr.mxu0 0.0
    %792 = vmatpush1.msra.mxu0 %v680
    %793 = vmatprep.subr.mxu0 0.0
    %794 = vmatpush1.msra.mxu0 %v681
    %795 = vmatprep.subr.mxu0 0.0
    %796 = vmatpush1.msra.mxu0 %v682
    %797 = vmatprep.subr.mxu0 0.0
    %798 = vmatpush1.msra.mxu0 %v683
    %799 = vmatprep.subr.mxu0 0.0
    %800 = vmatpush1.msra.mxu0 %v684
    %801 = vmatprep.subr.mxu0 0.0
    %802 = vmatpush1.msra.mxu0 %v685
    %803 = vmatprep.subr.mxu0 0.0
    %804 = vmatpush1.msra.mxu0 %v686
    %805 = vmatprep.subr.mxu0 0.0
    %806 = vmatpush1.msra.mxu0 %v687
    %807 = vmatprep.mubr.f32.mxu0 %v737
    %808 = vmatmul.mubr.f32.gmra.mrb[0].mxu0 %v729
    %v809 = vpop.f32.mrb[0].mxu0
    %v810 = vadd.f32 0.0, %v809
    %v811 = vpop.f32.mrb[0].mxu0
    %812 = vdwg.mxu0
    %813 = vmatprep.subr.mxu0 0.0
    %814 = vmatpush1.msra.mxu0 %v688
    %815 = vmatprep.subr.mxu0 0.0
    %816 = vmatpush1.msra.mxu0 %v689
    %817 = vmatprep.subr.mxu0 0.0
    %818 = vmatpush1.msra.mxu0 %v690
    %819 = vmatprep.subr.mxu0 0.0
    %820 = vmatpush1.msra.mxu0 %v691
    %821 = vmatprep.subr.mxu0 0.0
    %822 = vmatpush1.msra.mxu0 %v692
    %823 = vmatprep.subr.mxu0 0.0
    %824 = vmatpush1.msra.mxu0 %v693
    %825 = vmatprep.subr.mxu0 0.0
    %826 = vmatpush1.msra.mxu0 %v694
    %827 = vmatprep.subr.mxu0 0.0
    %828 = vmatpush1.msra.mxu0 %v695
    %829 = vmatprep.subr.mxu0 0.0
    %830 = vmatpush1.msra.mxu0 %v696
    %831 = vmatprep.subr.mxu0 0.0
    %832 = vmatpush1.msra.mxu0 %v697
    %833 = vmatprep.subr.mxu0 0.0
    %834 = vmatpush1.msra.mxu0 %v698
    %835 = vmatprep.subr.mxu0 0.0
    %836 = vmatpush1.msra.mxu0 %v699
    %837 = vmatprep.subr.mxu0 0.0
    %838 = vmatpush1.msra.mxu0 %v700
    %839 = vmatprep.subr.mxu0 0.0
    %840 = vmatpush1.msra.mxu0 %v701
    %841 = vmatprep.subr.mxu0 0.0
    %842 = vmatpush1.msra.mxu0 %v702
    %843 = vmatprep.subr.mxu0 0.0
    %844 = vmatpush1.msra.mxu0 %v703
    %845 = vmatprep.subr.mxu0 0.0
    %846 = vmatpush1.msra.mxu0 %v704
    %847 = vmatprep.subr.mxu0 0.0
    %848 = vmatpush1.msra.mxu0 %v705
    %849 = vmatprep.subr.mxu0 0.0
    %850 = vmatpush1.msra.mxu0 %v706
    %851 = vmatprep.subr.mxu0 0.0
    %852 = vmatpush1.msra.mxu0 %v707
    %853 = vmatprep.subr.mxu0 0.0
    %854 = vmatpush1.msra.mxu0 %v708
    %855 = vmatprep.subr.mxu0 0.0
    %856 = vmatpush1.msra.mxu0 %v709
    %857 = vmatprep.subr.mxu0 0.0
    %858 = vmatpush1.msra.mxu0 %v710
    %859 = vmatprep.subr.mxu0 0.0
    %860 = vmatpush1.msra.mxu0 %v711
    %861 = vmatprep.subr.mxu0 0.0
    %862 = vmatpush1.msra.mxu0 %v712
    %863 = vmatprep.subr.mxu0 0.0
    %864 = vmatpush1.msra.mxu0 %v713
    %865 = vmatprep.subr.mxu0 0.0
    %866 = vmatpush1.msra.mxu0 %v714
    %867 = vmatprep.subr.mxu0 0.0
    %868 = vmatpush1.msra.mxu0 %v715
    %869 = vmatprep.subr.mxu0 0.0
    %870 = vmatpush1.msra.mxu0 %v716
    %871 = vmatprep.subr.mxu0 0.0
    %872 = vmatpush1.msra.mxu0 %v717
    %873 = vmatprep.subr.mxu0 0.0
    %874 = vmatpush1.msra.mxu0 %v718
    %875 = vmatprep.subr.mxu0 0.0
    %876 = vmatpush1.msra.mxu0 %v719
    %877 = vmatprep.mubr.f32.mxu0 %v738
    %878 = vmatmul.mubr.f32.gmra.mrb[0].mxu0 %v736
    %v879 = vpop.f32.mrb[0].mxu0
    %v880 = vadd.f32 %v810, %v879
    %v881 = vpop.f32.mrb[0].mxu0
    %882 = vdwg.mxu0
    %v883 = vld [vmem:[%s4] sm:$0xff]
    %v884 = vld [vmem:[%s4 + $0x8] sm:$0xff]
    %v885 = vld [vmem:[%s4 + $0x10] sm:$0xff]
    %v886 = vld [vmem:[%s4 + $0x18] sm:$0xff]
    %v887 = vld [vmem:[%s4 + $0x20] sm:$0xff]
    %v888 = vld [vmem:[%s4 + $0x28] sm:$0xff]
    %v889 = vld [vmem:[%s4 + $0x30] sm:$0xff]
    %v890 = vld [vmem:[%s4 + $0x38] sm:$0xff]
    %v891 = vld [vmem:[%s4 + $0x40] sm:$0xff]
    %v892 = vld [vmem:[%s4 + $0x48] sm:$0xff]
    %v893 = vld [vmem:[%s4 + $0x50] sm:$0xff]
    %v894 = vld [vmem:[%s4 + $0x58] sm:$0xff]
    %v895 = vld [vmem:[%s4 + $0x60] sm:$0xff]
    %v896 = vld [vmem:[%s4 + $0x68] sm:$0xff]
    %v897 = vld [vmem:[%s4 + $0x70] sm:$0xff]
    %v898 = vld [vmem:[%s4 + $0x78] sm:$0xff]
    %v899 = vld [vmem:[%s5] sm:$0x1]
    %v901 = vlaneseq
    %v902 = vshrl.u32 %v901, 7
    %v903 = vsub.s32 0, %v902
    %v904 = vrot.slane %v899, %v903
    %906 = vmatprep.subr.mxu0 0.0
    %907 = vmatpush1.msra.mxu0 %v883
    %908 = vmatprep.subr.mxu0 0.0
    %909 = vmatpush1.msra.mxu0 %v884
    %910 = vmatprep.subr.mxu0 0.0
    %911 = vmatpush1.msra.mxu0 %v885
    %912 = vmatprep.subr.mxu0 0.0
    %913 = vmatpush1.msra.mxu0 %v886
    %914 = vmatprep.subr.mxu0 0.0
    %915 = vmatpush1.msra.mxu0 %v887
    %916 = vmatprep.subr.mxu0 0.0
    %917 = vmatpush1.msra.mxu0 %v888
    %918 = vmatprep.subr.mxu0 0.0
    %919 = vmatpush1.msra.mxu0 %v889
    %920 = vmatprep.subr.mxu0 0.0
    %921 = vmatpush1.msra.mxu0 %v890
    %922 = vmatprep.subr.mxu0 0.0
    %923 = vmatpush1.msra.mxu0 %v891
    %924 = vmatprep.subr.mxu0 0.0
    %925 = vmatpush1.msra.mxu0 %v892
    %926 = vmatprep.subr.mxu0 0.0
    %927 = vmatpush1.msra.mxu0 %v893
    %928 = vmatprep.subr.mxu0 0.0
    %929 = vmatpush1.msra.mxu0 %v894
    %930 = vmatprep.subr.mxu0 0.0
    %931 = vmatpush1.msra.mxu0 %v895
    %932 = vmatprep.subr.mxu0 0.0
    %933 = vmatpush1.msra.mxu0 %v896
    %934 = vmatprep.subr.mxu0 0.0
    %935 = vmatpush1.msra.mxu0 %v897
    %936 = vmatprep.subr.mxu0 0.0
    %937 = vmatpush1.msra.mxu0 %v898
    %938 = vmatprep.subr.mxu0 0.0
    %939 = vmatpush1.msra.mxu0 0.0
    %940 = vmatprep.subr.mxu0 0.0
    %941 = vmatpush1.msra.mxu0 0.0
    %942 = vmatprep.subr.mxu0 0.0
    %943 = vmatpush1.msra.mxu0 0.0
    %944 = vmatprep.subr.mxu0 0.0
    %945 = vmatpush1.msra.mxu0 0.0
    %946 = vmatprep.subr.mxu0 0.0
    %947 = vmatpush1.msra.mxu0 0.0
    %948 = vmatprep.subr.mxu0 0.0
    %949 = vmatpush1.msra.mxu0 0.0
    %950 = vmatprep.subr.mxu0 0.0
    %951 = vmatpush1.msra.mxu0 0.0
    %952 = vmatprep.subr.mxu0 0.0
    %953 = vmatpush1.msra.mxu0 0.0
    %954 = vmatprep.subr.mxu0 0.0
    %955 = vmatpush1.msra.mxu0 0.0
    %956 = vmatprep.subr.mxu0 0.0
    %957 = vmatpush1.msra.mxu0 0.0
    %958 = vmatprep.subr.mxu0 0.0
    %959 = vmatpush1.msra.mxu0 0.0
    %960 = vmatprep.subr.mxu0 0.0
    %961 = vmatpush1.msra.mxu0 0.0
    %962 = vmatprep.subr.mxu0 0.0
    %963 = vmatpush1.msra.mxu0 0.0
    %964 = vmatprep.subr.mxu0 0.0
    %965 = vmatpush1.msra.mxu0 0.0
    %966 = vmatprep.subr.mxu0 0.0
    %967 = vmatpush1.msra.mxu0 0.0
    %968 = vmatprep.subr.mxu0 0.0
    %969 = vmatpush1.msra.mxu0 0.0
    %970 = vmatprep.mubr.f32.mxu0 0.0
    %971 = vmatmul.mubr.f32.gmra.mrb[0].mxu0 %v880
    %v972 = vpop.f32.mrb[0].mxu0
    %v973 = vadd.f32 %v904, %v972
    %v974 = vpop.f32.mrb[0].mxu0
    %975 = vdwg.mxu0
    %976 = vst [vmem:[#allocation2] sm:$0x3] %v973
    %v977 = vld [vmem:[%s6] sm:$0xff]
    %v978 = vld [vmem:[%s6 + $0x8] sm:$0xff]
    %v979 = vld [vmem:[%s6 + $0x10] sm:$0xff]
    %v980 = vld [vmem:[%s6 + $0x18] sm:$0xff]
    %v981 = vld [vmem:[%s6 + $0x20] sm:$0xff]
    %v982 = vld [vmem:[%s6 + $0x28] sm:$0xff]
    %v983 = vld [vmem:[%s6 + $0x30] sm:$0xff]
    %v984 = vld [vmem:[%s6 + $0x38] sm:$0xff]
    %v985 = vld [vmem:[%s6 + $0x40] sm:$0xff]
    %v986 = vld [vmem:[%s6 + $0x48] sm:$0xff]
    %v987 = vld [vmem:[%s6 + $0x50] sm:$0xff]
    %v988 = vld [vmem:[%s6 + $0x58] sm:$0xff]
    %v989 = vld [vmem:[%s6 + $0x60] sm:$0xff]
    %v990 = vld [vmem:[%s6 + $0x68] sm:$0xff]
    %v991 = vld [vmem:[%s6 + $0x70] sm:$0xff]
    %v992 = vld [vmem:[%s6 + $0x78] sm:$0xff]
    %v993 = vld [vmem:[%s7] sm:$0x1]
    %v995 = vlaneseq
    %v996 = vshrl.u32 %v995, 7
    %v997 = vsub.s32 0, %v996
    %v998 = vrot.slane %v993, %v997
    %1000 = vmatprep.subr.mxu0 0.0
    %1001 = vmatpush1.msra.mxu0 %v977
    %1002 = vmatprep.subr.mxu0 0.0
    %1003 = vmatpush1.msra.mxu0 %v978
    %1004 = vmatprep.subr.mxu0 0.0
    %1005 = vmatpush1.msra.mxu0 %v979
    %1006 = vmatprep.subr.mxu0 0.0
    %1007 = vmatpush1.msra.mxu0 %v980
    %1008 = vmatprep.subr.mxu0 0.0
    %1009 = vmatpush1.msra.mxu0 %v981
    %1010 = vmatprep.subr.mxu0 0.0
    %1011 = vmatpush1.msra.mxu0 %v982
    %1012 = vmatprep.subr.mxu0 0.0
    %1013 = vmatpush1.msra.mxu0 %v983
    %1014 = vmatprep.subr.mxu0 0.0
    %1015 = vmatpush1.msra.mxu0 %v984
    %1016 = vmatprep.subr.mxu0 0.0
    %1017 = vmatpush1.msra.mxu0 %v985
    %1018 = vmatprep.subr.mxu0 0.0
    %1019 = vmatpush1.msra.mxu0 %v986
    %1020 = vmatprep.subr.mxu0 0.0
    %1021 = vmatpush1.msra.mxu0 %v987
    %1022 = vmatprep.subr.mxu0 0.0
    %1023 = vmatpush1.msra.mxu0 %v988
    %1024 = vmatprep.subr.mxu0 0.0
    %1025 = vmatpush1.msra.mxu0 %v989
    %1026 = vmatprep.subr.mxu0 0.0
    %1027 = vmatpush1.msra.mxu0 %v990
    %1028 = vmatprep.subr.mxu0 0.0
    %1029 = vmatpush1.msra.mxu0 %v991
    %1030 = vmatprep.subr.mxu0 0.0
    %1031 = vmatpush1.msra.mxu0 %v992
    %1032 = vmatprep.subr.mxu0 0.0
    %1033 = vmatpush1.msra.mxu0 0.0
    %1034 = vmatprep.subr.mxu0 0.0
    %1035 = vmatpush1.msra.mxu0 0.0
    %1036 = vmatprep.subr.mxu0 0.0
    %1037 = vmatpush1.msra.mxu0 0.0
    %1038 = vmatprep.subr.mxu0 0.0
    %1039 = vmatpush1.msra.mxu0 0.0
    %1040 = vmatprep.subr.mxu0 0.0
    %1041 = vmatpush1.msra.mxu0 0.0
    %1042 = vmatprep.subr.mxu0 0.0
    %1043 = vmatpush1.msra.mxu0 0.0
    %1044 = vmatprep.subr.mxu0 0.0
    %1045 = vmatpush1.msra.mxu0 0.0
    %1046 = vmatprep.subr.mxu0 0.0
    %1047 = vmatpush1.msra.mxu0 0.0
    %1048 = vmatprep.subr.mxu0 0.0
    %1049 = vmatpush1.msra.mxu0 0.0
    %1050 = vmatprep.subr.mxu0 0.0
    %1051 = vmatpush1.msra.mxu0 0.0
    %1052 = vmatprep.subr.mxu0 0.0
    %1053 = vmatpush1.msra.mxu0 0.0
    %1054 = vmatprep.subr.mxu0 0.0
    %1055 = vmatpush1.msra.mxu0 0.0
    %1056 = vmatprep.subr.mxu0 0.0
    %1057 = vmatpush1.msra.mxu0 0.0
    %1058 = vmatprep.subr.mxu0 0.0
    %1059 = vmatpush1.msra.mxu0 0.0
    %1060 = vmatprep.subr.mxu0 0.0
    %1061 = vmatpush1.msra.mxu0 0.0
    %1062 = vmatprep.subr.mxu0 0.0
    %1063 = vmatpush1.msra.mxu0 0.0
    %1064 = vmatprep.mubr.f32.mxu0 0.0
    %1065 = vmatmul.mubr.f32.gmra.mrb[0].mxu0 %v973
    %v1066 = vpop.f32.mrb[0].mxu0
    %v1067 = vadd.f32 %v998, %v1066
    %v1068 = vpop.f32.mrb[0].mxu0
    %1069 = vdwg.mxu0
    %v1070 = vmax.f32 %v1067, 0.0
    %v1071 = vld [vmem:[%s8] sm:$0xff]
    %v1072 = vld [vmem:[%s8 + $0x8] sm:$0xff]
    %v1073 = vld [vmem:[%s8 + $0x10] sm:$0xff]
    %v1074 = vld [vmem:[%s8 + $0x18] sm:$0xff]
    %v1075 = vld [vmem:[%s8 + $0x20] sm:$0xff]
    %v1076 = vld [vmem:[%s8 + $0x28] sm:$0xff]
    %v1077 = vld [vmem:[%s8 + $0x30] sm:$0xff]
    %v1078 = vld [vmem:[%s8 + $0x38] sm:$0xff]
    %v1079 = vld [vmem:[%s8 + $0x40] sm:$0xff]
    %v1080 = vld [vmem:[%s8 + $0x48] sm:$0xff]
    %v1081 = vld [vmem:[%s8 + $0x50] sm:$0xff]
    %v1082 = vld [vmem:[%s8 + $0x58] sm:$0xff]
    %v1083 = vld [vmem:[%s8 + $0x60] sm:$0xff]
    %v1084 = vld [vmem:[%s8 + $0x68] sm:$0xff]
    %v1085 = vld [vmem:[%s8 + $0x70] sm:$0xff]
    %v1086 = vld [vmem:[%s8 + $0x78] sm:$0xff]
    %v1087 = vld [vmem:[%s9] sm:$0x1]
    %v1089 = vlaneseq
    %v1090 = vshrl.u32 %v1089, 7
    %v1091 = vsub.s32 0, %v1090
    %v1092 = vrot.slane %v1087, %v1091
    %1094 = vmatprep.subr.mxu0 0.0
    %1095 = vmatpush1.msra.mxu0 %v1071
    %1096 = vmatprep.subr.mxu0 0.0
    %1097 = vmatpush1.msra.mxu0 %v1072
    %1098 = vmatprep.subr.mxu0 0.0
    %1099 = vmatpush1.msra.mxu0 %v1073
    %1100 = vmatprep.subr.mxu0 0.0
    %1101 = vmatpush1.msra.mxu0 %v1074
    %1102 = vmatprep.subr.mxu0 0.0
    %1103 = vmatpush1.msra.mxu0 %v1075
    %1104 = vmatprep.subr.mxu0 0.0
    %1105 = vmatpush1.msra.mxu0 %v1076
    %1106 = vmatprep.subr.mxu0 0.0
    %1107 = vmatpush1.msra.mxu0 %v1077
    %1108 = vmatprep.subr.mxu0 0.0
    %1109 = vmatpush1.msra.mxu0 %v1078
    %1110 = vmatprep.subr.mxu0 0.0
    %1111 = vmatpush1.msra.mxu0 %v1079
    %1112 = vmatprep.subr.mxu0 0.0
    %1113 = vmatpush1.msra.mxu0 %v1080
    %1114 = vmatprep.subr.mxu0 0.0
    %1115 = vmatpush1.msra.mxu0 %v1081
    %1116 = vmatprep.subr.mxu0 0.0
    %1117 = vmatpush1.msra.mxu0 %v1082
    %1118 = vmatprep.subr.mxu0 0.0
    %1119 = vmatpush1.msra.mxu0 %v1083
    %1120 = vmatprep.subr.mxu0 0.0
    %1121 = vmatpush1.msra.mxu0 %v1084
    %1122 = vmatprep.subr.mxu0 0.0
    %1123 = vmatpush1.msra.mxu0 %v1085
    %1124 = vmatprep.subr.mxu0 0.0
    %1125 = vmatpush1.msra.mxu0 %v1086
    %1126 = vmatprep.subr.mxu0 0.0
    %1127 = vmatpush1.msra.mxu0 0.0
    %1128 = vmatprep.subr.mxu0 0.0
    %1129 = vmatpush1.msra.mxu0 0.0
    %1130 = vmatprep.subr.mxu0 0.0
    %1131 = vmatpush1.msra.mxu0 0.0
    %1132 = vmatprep.subr.mxu0 0.0
    %1133 = vmatpush1.msra.mxu0 0.0
    %1134 = vmatprep.subr.mxu0 0.0
    %1135 = vmatpush1.msra.mxu0 0.0
    %1136 = vmatprep.subr.mxu0 0.0
    %1137 = vmatpush1.msra.mxu0 0.0
    %1138 = vmatprep.subr.mxu0 0.0
    %1139 = vmatpush1.msra.mxu0 0.0
    %1140 = vmatprep.subr.mxu0 0.0
    %1141 = vmatpush1.msra.mxu0 0.0
    %1142 = vmatprep.subr.mxu0 0.0
    %1143 = vmatpush1.msra.mxu0 0.0
    %1144 = vmatprep.subr.mxu0 0.0
    %1145 = vmatpush1.msra.mxu0 0.0
    %1146 = vmatprep.subr.mxu0 0.0
    %1147 = vmatpush1.msra.mxu0 0.0
    %1148 = vmatprep.subr.mxu0 0.0
    %1149 = vmatpush1.msra.mxu0 0.0
    %1150 = vmatprep.subr.mxu0 0.0
    %1151 = vmatpush1.msra.mxu0 0.0
    %1152 = vmatprep.subr.mxu0 0.0
    %1153 = vmatpush1.msra.mxu0 0.0
    %1154 = vmatprep.subr.mxu0 0.0
    %1155 = vmatpush1.msra.mxu0 0.0
    %1156 = vmatprep.subr.mxu0 0.0
    %1157 = vmatpush1.msra.mxu0 0.0
    %1158 = vmatprep.mubr.f32.mxu0 0.0
    %1159 = vmatmul.mubr.f32.gmra.mrb[0].mxu0 %v1070
    %v1160 = vpop.f32.mrb[0].mxu0
    %v1161 = vadd.f32 %v1092, %v1160
    %v1162 = vpop.f32.mrb[0].mxu0
    %1163 = vdwg.mxu0
    %v1164 = vmax.f32 %v1161, -13.815511
    %v1165 = vsub.f32 -13.815511, %v1164
    %v1166 = vmul.f32 %v1165, 1.442695
    %v1167 = vpow.pop %v1166
    %v1168 = vsub.f32 %v1161, %v1164
    %v1169 = vmul.f32 %v1168, 1.442695
    %v1170 = vpow.pop %v1169
    %v1171 = vadd.f32 %v1167, %v1170
    %v1172 = vlog2.pop %v1171
    %v1173 = vmul.f32 %v1172, 0.6931472
    %v1174 = vadd.f32 %v1164, %v1173
    %1175 = vst [vmem:[#allocation4] sm:$0x3] %v1174
    // Predicated region
    $region42: #{_pfe_forward_impl.1} parent=1 // pred_check
      _
    $region43: #{_pfe_forward_impl.1} parent=1 // pred_check_branch
      %1177 = sbr.rel (0) target = $region45
    $region44: #{_pfe_forward_impl.1} parent=1 // pred_region
      %s1179 = ssub.s32 32, 32
      %1180 = vsyncadd [#allocation3], %s1179
      %s1182 = sshll.u32 [#allocation2], 4
      %s1183 = int_to_ptr.vmem [resolvable:$true] %s1182
      %1185 = dma.vmem_to_hbm [thread:$0]  %s1183, 32, %s10, [#allocation3]
    $region45: #{_pfe_forward_impl.1} parent=1 // pred_fallthru
      _
    // Predicated region
    $region46: #{_pfe_forward_impl.1} parent=1 // pred_check
      _
    $region47: #{_pfe_forward_impl.1} parent=1 // pred_check_branch
      %1187 = sbr.rel (0) target = $region49
    $region48: #{_pfe_forward_impl.1} parent=1 // pred_region
      %s1189 = ssub.s32 32, 32
      %1190 = vsyncadd [#allocation5], %s1189
      %s1192 = sshll.u32 [#allocation4], 4
      %s1193 = int_to_ptr.vmem [resolvable:$true] %s1192
      %1195 = dma.vmem_to_hbm [thread:$0]  %s1193, 32, %s11, [#allocation5]
    $region49: #{_pfe_forward_impl.1} parent=1 // pred_fallthru
      _
    // Predicated region
    $region50: #{_pfe_forward_impl.1} parent=1 // pred_check
      _
    $region51: #{_pfe_forward_impl.1} parent=1 // pred_check_branch
      %1197 = sbr.rel (0) target = $region53
    $region52: #{_pfe_forward_impl.1} parent=1 // pred_region
      %1198 = dma.done [#allocation3], 32
    $region53: #{_pfe_forward_impl.1} parent=1 // pred_fallthru
      _
    // Predicated region
    $region54: #{_pfe_forward_impl.1} parent=1 // pred_check
      _
    $region55: #{_pfe_forward_impl.1} parent=1 // pred_check_branch
      %1200 = sbr.rel (0) target = $region57
    $region56: #{_pfe_forward_impl.1} parent=1 // pred_region
      %1201 = dma.done [#allocation5], 32
    $region57: #{_pfe_forward_impl.1} parent=1 // pred_fallthru
      _
    %1202 = vsyncpa [#allocation3], 1
    %1203 = vsyncpa [#allocation5], 1

</llo_original>
